<compile_context>
chip_gen: v7x
topology: tpu7x:2x2x1
jax: 0.10.0
libtpu: 0.0.40
codegen_flags: <defaults>
</compile_context>

<pallas_src>
import functools

import jax
import jax.numpy as jnp
import numpy as np
from jax.experimental import pallas as pl
from jax.experimental.pallas import tpu as pltpu

# vggish_params constants (from the original VGGish repo)
EMBEDDING_SIZE = 128
QUANTIZE_MIN_VAL = -2.0
QUANTIZE_MAX_VAL = +2.0
_SCALE = 255.0 / (QUANTIZE_MAX_VAL - QUANTIZE_MIN_VAL)   # 63.75


def _postprocessor_kernel(x_ref, w_ref, b_ref, o_ref):
    # x_ref: (TM, 128) f32   w_ref: (128, 128) f32 (pre-transposed: (in, out))
    # b_ref: (1, 128)  f32   o_ref: (TM, 128) u8
    y = jnp.dot(x_ref[...], w_ref[...],
                preferred_element_type=jnp.float32) + b_ref[...]
    y = jnp.clip(y, QUANTIZE_MIN_VAL, QUANTIZE_MAX_VAL)
    q = (y - QUANTIZE_MIN_VAL) * _SCALE          # in [0, 255]
    # f32 -> u8 truncation matches torch's .to(torch.uint8)
    o_ref[...] = q.astype(jnp.uint8)


def _round_up(a, b):
    return ((a + b - 1) // b) * b


def _choose_tile(n, max_tm):
    # Multiple of 32 so the uint8 output tile is an integer number of packed
    # (32, 128) vregs. Small batches -> a single grid step (no extra stepping
    # overhead on single-TC chips); large batches -> capped big tile.
    if n <= max_tm:
        return int(max(32, _round_up(n, 32)))
    return int(max_tm)


@functools.partial(jax.jit, static_argnames=("max_tm",))
def postprocessor(x, weight, bias, *, max_tm=8192):
    """x: (N, 128) f32; weight: (128, 128) torch layout (out, in); bias: (128,)."""
    n, d = x.shape
    assert d == EMBEDDING_SIZE

    # Torch Linear stores weight as (out_features, in_features); transpose under
    # jit so it fuses (128x128 f32, negligible).
    w_t = weight.T.astype(jnp.float32)                       # (in, out)
    b2 = bias.astype(jnp.float32).reshape(1, EMBEDDING_SIZE)

    tm = _choose_tile(n, max_tm)
    grid = pl.cdiv(n, tm)   # ragged last block handled by Pallas (OOB writes dropped)

    out = pl.pallas_call(
        _postprocessor_kernel,
        out_shape=jax.ShapeDtypeStruct((n, EMBEDDING_SIZE), jnp.uint8),
        grid_spec=pltpu.PrefetchScalarGridSpec(
            num_scalar_prefetch=0,
            grid=(grid,),
            in_specs=[
                pl.BlockSpec((tm, EMBEDDING_SIZE), lambda i: (i, 0)),
                # constant index_map -> weight/bias stay resident in VMEM
                pl.BlockSpec((EMBEDDING_SIZE, EMBEDDING_SIZE), lambda i: (0, 0)),
                pl.BlockSpec((1, EMBEDDING_SIZE), lambda i: (0, 0)),
            ],
            out_specs=pl.BlockSpec((tm, EMBEDDING_SIZE), lambda i: (i, 0)),
        ),
        compiler_params=pltpu.CompilerParams(
            dimension_semantics=("parallel",),
            vmem_limit_bytes=32 * 1024 * 1024),
    )(x, w_t, b2)

    return out


def _reference(x, weight, bias):
    # Pure f32 reference with the original module's semantics.
    y = x @ weight.T + bias[None, :]
    y = jnp.clip(y, QUANTIZE_MIN_VAL, QUANTIZE_MAX_VAL)
    q = (y - QUANTIZE_MIN_VAL) * _SCALE
    return q.astype(jnp.uint8)


if __name__ == "__main__":
    key = jax.random.PRNGKey(0)
    kx, kw, kb = jax.random.split(key, 3)

    batch = 50  # deliberately NOT a multiple of 32: exercises the ragged-block path
    x = jax.random.normal(kx, (batch, EMBEDDING_SIZE), dtype=jnp.float32)
    # deterministic synthetic Linear params (torch layout: (out_features, in_features))
    weight = (jax.random.normal(kw, (EMBEDDING_SIZE, EMBEDDING_SIZE), dtype=jnp.float32)
              * (1.0 / np.sqrt(EMBEDDING_SIZE)))
    bias = jax.random.normal(kb, (EMBEDDING_SIZE,), dtype=jnp.float32) * 0.1

    out = jax.block_until_ready(postprocessor(x, weight, bias))
    ref = jax.block_until_ready(_reference(x, weight, bias))

    assert out.dtype == jnp.uint8
    assert out.shape == (batch, EMBEDDING_SIZE)
    # allow +/-1 LSB at clamp / truncation boundaries (matmul accumulation order
    # can differ from the XLA reference by <1 ulp)
    diff = np.abs(np.asarray(out, np.int32) - np.asarray(ref, np.int32))
    assert diff.max() <= 1, f"max quantized diff {diff.max()}"

    print("KERNEL_OK")
</pallas_src>

<mosaic_0001>
module attributes {stable_mosaic.version = 11 : i64} {
  func.func @_postprocessor_kernel(%arg0: i32, %arg1: memref<64x128xf32, #tpu.memory_space<vmem>>, %arg2: memref<128x128xf32, #tpu.memory_space<vmem>>, %arg3: memref<1x128xf32, #tpu.memory_space<vmem>>, %arg4: memref<64x128xi8, #tpu.memory_space<vmem>>) attributes {dimension_semantics = [#tpu.dimension_semantics<parallel>], iteration_bounds = array<i64: 1>, scalar_prefetch = 0 : i64, scratch_operands = 0 : i64, tpu.core_type = #tpu.core_type<tc>, window_params = [{transform_indices = @transform_0, window_bounds = array<i64: 64, 128>}, {pipeline_mode = #tpu.pipeline_mode<synchronous>, transform_indices = @transform_1, window_bounds = array<i64: 128, 128>}, {pipeline_mode = #tpu.pipeline_mode<synchronous>, transform_indices = @transform_2, window_bounds = array<i64: 1, 128>}, {transform_indices = @transform_3, window_bounds = array<i64: 64, 128>}]} {
    %c0 = arith.constant 0 : index
    %c0_0 = arith.constant 0 : index
    %0 = vector.load %arg1[%c0, %c0_0] : memref<64x128xf32, #tpu.memory_space<vmem>>, vector<64x128xf32>
    %c0_1 = arith.constant 0 : index
    %c0_2 = arith.constant 0 : index
    %1 = vector.load %arg2[%c0_1, %c0_2] : memref<128x128xf32, #tpu.memory_space<vmem>>, vector<128x128xf32>
    %cst = arith.constant dense<0.000000e+00> : vector<64x128xf32>
    %2 = tpu.matmul %0, %1, %cst {dimension_numbers = #tpu.dot_dimension_numbers<[1], [0], [0], [1], [0, 0, 1, 1], [], []>} : vector<64x128xf32>, vector<128x128xf32>, vector<64x128xf32> -> vector<64x128xf32>
    %c0_3 = arith.constant 0 : index
    %c0_4 = arith.constant 0 : index
    %3 = vector.load %arg3[%c0_3, %c0_4] : memref<1x128xf32, #tpu.memory_space<vmem>>, vector<1x128xf32>
    %4 = vector.broadcast %3 : vector<1x128xf32> to vector<64x128xf32>
    %5 = arith.addf %2, %4 : vector<64x128xf32>
    %cst_5 = arith.constant -2.000000e+00 : f32
    %cst_6 = arith.constant 2.000000e+00 : f32
    %6 = vector.broadcast %cst_5 : f32 to vector<64x128xf32>
    %7 = arith.maximumf %6, %5 : vector<64x128xf32>
    %8 = vector.broadcast %cst_6 : f32 to vector<64x128xf32>
    %9 = arith.minimumf %8, %7 : vector<64x128xf32>
    %cst_7 = arith.constant -2.000000e+00 : f32
    %10 = vector.broadcast %cst_7 : f32 to vector<64x128xf32>
    %11 = arith.subf %9, %10 : vector<64x128xf32>
    %cst_8 = arith.constant 6.375000e+01 : f32
    %12 = vector.broadcast %cst_8 : f32 to vector<64x128xf32>
    %13 = arith.mulf %11, %12 : vector<64x128xf32>
    %14 = arith.fptoui %13 : vector<64x128xf32> to vector<64x128xi8>
    %c0_9 = arith.constant 0 : index
    %c0_10 = arith.constant 0 : index
    %15 = vector.load %arg4[%c0_9, %c0_10] : memref<64x128xi8, #tpu.memory_space<vmem>>, vector<64x128xi8>
    tpu.vector_store %arg4[%c0_9, %c0_10], %14 {strides = array<i32>} : memref<64x128xi8, #tpu.memory_space<vmem>>, vector<64x128xi8>,
    return
  }
  func.func @transform_0(%arg0: i32) -> (i32, i32) {
    %c0_i32 = arith.constant 0 : i32
    %c0_i32_0 = arith.constant 0 : i32
    return %arg0, %c0_i32 : i32, i32
  }
  func.func @transform_1(%arg0: i32) -> (i32, i32) {
    %c0_i32 = arith.constant 0 : i32
    %c0_i32_0 = arith.constant 0 : i32
    %c0_i32_1 = arith.constant 0 : i32
    return %c0_i32, %c0_i32_0 : i32, i32
  }
  func.func @transform_2(%arg0: i32) -> (i32, i32) {
    %c0_i32 = arith.constant 0 : i32
    %c0_i32_0 = arith.constant 0 : i32
    %c0_i32_1 = arith.constant 0 : i32
    return %c0_i32, %c0_i32_0 : i32, i32
  }
  func.func @transform_3(%arg0: i32) -> (i32, i32) {
    %c0_i32 = arith.constant 0 : i32
    %c0_i32_0 = arith.constant 0 : i32
    return %arg0, %c0_i32 : i32, i32
  }
}

</mosaic_0001>

<llo_original>
// kernel: postprocessor.1
$region0: #{postprocessor.1}
  #allocation0 [shape = 'u32[]', space=smem, size = 0x4, offset = 0x4, fixed_abs, tag = 'smem constant byte address 0x4 - core index']
  #allocation1 [shape = 'u32[144,128]{1,0:T(1,128)}', space=vmem, size = 0x12000, scoped, tag = 'internal scratch']
  %s0 = inlined_call_operand.vmem [shape: f32[50,128], index: 0, kind: input, shape index: {}]
  %s1 = inlined_call_operand.vmem [shape: f32[128,128], index: 1, kind: input, shape index: {}]
  %s2 = inlined_call_operand.vmem [shape: f32[1,128], index: 2, kind: input, shape index: {}]
  %s3 = inlined_call_operand.hbm [shape: u8[50,128], index: 3, kind: output, shape index: {}]
  %s4 = sld [smem:[#allocation0]]
  $region22: #{postprocessor.1} parent=0
    _
  %s6 = ssub.s32 1, %s4
  %s7 = scalar_select 0, %s6, %s4
  $region1: #{postprocessor.1} parent=0
    #allocation2 [shape = 'u8[8192]{0}', space=vmem, size = 0x2000, scoped, tag = 'output window, operand 0, single buffered']
    #allocation3 [shape = 's32[1]{0}', space=sflag, size = 0x4, scoped, tag = 'scoped memory for postprocessor.1']
    %8 = vsyncpa [#allocation3], 0
    // Predicated region
    $region2: #{postprocessor.1} parent=1 // pred_check
      _
    $region3: #{postprocessor.1} parent=1 // pred_check_branch
      %10 = sbr.rel (0) target = $region5
    $region4: #{postprocessor.1} parent=1 // pred_region
      _
    $region5: #{postprocessor.1} parent=1 // pred_fallthru
      _
    // Predicated region
    $region6: #{postprocessor.1} parent=1 // pred_check
      _
    $region7: #{postprocessor.1} parent=1 // pred_check_branch
      %12 = sbr.rel (0) target = $region9
    $region8: #{postprocessor.1} parent=1 // pred_region
      _
    $region9: #{postprocessor.1} parent=1 // pred_fallthru
      _
    // Predicated region
    $region10: #{postprocessor.1} parent=1 // pred_check
      _
    $region11: #{postprocessor.1} parent=1 // pred_check_branch
      %14 = sbr.rel (0) target = $region13
    $region12: #{postprocessor.1} parent=1 // pred_region
      _
    $region13: #{postprocessor.1} parent=1 // pred_fallthru
      _
    %v15 = vld [vmem:[%s0] sm:$0xff]
    %v16 = vld [vmem:[%s0 + $0x8] sm:$0xff]
    %v17 = vld [vmem:[%s0 + $0x10] sm:$0xff]
    %v18 = vld [vmem:[%s0 + $0x18] sm:$0xff]
    %v19 = vld [vmem:[%s0 + $0x20] sm:$0xff]
    %v20 = vld [vmem:[%s0 + $0x28] sm:$0xff]
    %v21 = vld [vmem:[%s0 + $0x30] sm:$0xff]
    %v22 = vld [vmem:[%s0 + $0x38] sm:$0xff]
    %v23 = vld [vmem:[%s1] sm:$0xff]
    %v24 = vld [vmem:[%s1 + $0x8] sm:$0xff]
    %v25 = vld [vmem:[%s1 + $0x10] sm:$0xff]
    %v26 = vld [vmem:[%s1 + $0x18] sm:$0xff]
    %v27 = vld [vmem:[%s1 + $0x20] sm:$0xff]
    %v28 = vld [vmem:[%s1 + $0x28] sm:$0xff]
    %v29 = vld [vmem:[%s1 + $0x30] sm:$0xff]
    %v30 = vld [vmem:[%s1 + $0x38] sm:$0xff]
    %v31 = vld [vmem:[%s1 + $0x40] sm:$0xff]
    %v32 = vld [vmem:[%s1 + $0x48] sm:$0xff]
    %v33 = vld [vmem:[%s1 + $0x50] sm:$0xff]
    %v34 = vld [vmem:[%s1 + $0x58] sm:$0xff]
    %v35 = vld [vmem:[%s1 + $0x60] sm:$0xff]
    %v36 = vld [vmem:[%s1 + $0x68] sm:$0xff]
    %v37 = vld [vmem:[%s1 + $0x70] sm:$0xff]
    %v38 = vld [vmem:[%s1 + $0x78] sm:$0xff]
    %v39 = vld [vmem:[%s2] sm:$0x1]
    %v41 = vlaneseq
    %v42 = vshrl.u32 %v41, 7
    %v43 = vsub.s32 0, %v42
    %v44 = vrot.slane %v39, %v43
    %46 = vmatprep.subr.mxu0 0.0
    %47 = vmatpush1.msra.mxu0 %v23
    %48 = vmatprep.subr.mxu0 0.0
    %49 = vmatpush1.msra.mxu0 %v24
    %50 = vmatprep.subr.mxu0 0.0
    %51 = vmatpush1.msra.mxu0 %v25
    %52 = vmatprep.subr.mxu0 0.0
    %53 = vmatpush1.msra.mxu0 %v26
    %54 = vmatprep.subr.mxu0 0.0
    %55 = vmatpush1.msra.mxu0 %v27
    %56 = vmatprep.subr.mxu0 0.0
    %57 = vmatpush1.msra.mxu0 %v28
    %58 = vmatprep.subr.mxu0 0.0
    %59 = vmatpush1.msra.mxu0 %v29
    %60 = vmatprep.subr.mxu0 0.0
    %61 = vmatpush1.msra.mxu0 %v30
    %62 = vmatprep.subr.mxu0 0.0
    %63 = vmatpush1.msra.mxu0 %v31
    %64 = vmatprep.subr.mxu0 0.0
    %65 = vmatpush1.msra.mxu0 %v32
    %66 = vmatprep.subr.mxu0 0.0
    %67 = vmatpush1.msra.mxu0 %v33
    %68 = vmatprep.subr.mxu0 0.0
    %69 = vmatpush1.msra.mxu0 %v34
    %70 = vmatprep.subr.mxu0 0.0
    %71 = vmatpush1.msra.mxu0 %v35
    %72 = vmatprep.subr.mxu0 0.0
    %73 = vmatpush1.msra.mxu0 %v36
    %74 = vmatprep.subr.mxu0 0.0
    %75 = vmatpush1.msra.mxu0 %v37
    %76 = vmatprep.subr.mxu0 0.0
    %77 = vmatpush1.msra.mxu0 %v38
    %78 = vmatprep.subr.mxu0 0.0
    %79 = vmatpush1.msra.mxu0 0.0
    %80 = vmatprep.subr.mxu0 0.0
    %81 = vmatpush1.msra.mxu0 0.0
    %82 = vmatprep.subr.mxu0 0.0
    %83 = vmatpush1.msra.mxu0 0.0
    %84 = vmatprep.subr.mxu0 0.0
    %85 = vmatpush1.msra.mxu0 0.0
    %86 = vmatprep.subr.mxu0 0.0
    %87 = vmatpush1.msra.mxu0 0.0
    %88 = vmatprep.subr.mxu0 0.0
    %89 = vmatpush1.msra.mxu0 0.0
    %90 = vmatprep.subr.mxu0 0.0
    %91 = vmatpush1.msra.mxu0 0.0
    %92 = vmatprep.subr.mxu0 0.0
    %93 = vmatpush1.msra.mxu0 0.0
    %94 = vmatprep.subr.mxu0 0.0
    %95 = vmatpush1.msra.mxu0 0.0
    %96 = vmatprep.subr.mxu0 0.0
    %97 = vmatpush1.msra.mxu0 0.0
    %98 = vmatprep.subr.mxu0 0.0
    %99 = vmatpush1.msra.mxu0 0.0
    %100 = vmatprep.subr.mxu0 0.0
    %101 = vmatpush1.msra.mxu0 0.0
    %102 = vmatprep.subr.mxu0 0.0
    %103 = vmatpush1.msra.mxu0 0.0
    %104 = vmatprep.subr.mxu0 0.0
    %105 = vmatpush1.msra.mxu0 0.0
    %106 = vmatprep.subr.mxu0 0.0
    %107 = vmatpush1.msra.mxu0 0.0
    %108 = vmatprep.subr.mxu0 0.0
    %109 = vmatpush1.msra.mxu0 0.0
    %110 = vmatprep.mubr.f32.mxu0 0.0
    %111 = vmatmul.mubr.f32.gmra.mrb[0].mxu0 %v15
    %v112 = vpop.f32.mrb[0].mxu0
    %v113 = vadd.f32 %v44, %v112
    %v114 = vpop.f32.mrb[0].mxu0
    %115 = vmatprep.mubr.f32.mxu0 0.0
    %116 = vmatmul.mubr.f32.gmra.mrb[0].mxu0 %v16
    %v117 = vpop.f32.mrb[0].mxu0
    %v118 = vadd.f32 %v44, %v117
    %v119 = vpop.f32.mrb[0].mxu0
    %120 = vmatprep.mubr.f32.mxu0 0.0
    %121 = vmatmul.mubr.f32.gmra.mrb[0].mxu0 %v17
    %v122 = vpop.f32.mrb[0].mxu0
    %v123 = vadd.f32 %v44, %v122
    %v124 = vpop.f32.mrb[0].mxu0
    %125 = vmatprep.mubr.f32.mxu0 0.0
    %126 = vmatmul.mubr.f32.gmra.mrb[0].mxu0 %v18
    %v127 = vpop.f32.mrb[0].mxu0
    %v128 = vadd.f32 %v44, %v127
    %v129 = vpop.f32.mrb[0].mxu0
    %130 = vmatprep.mubr.f32.mxu0 0.0
    %131 = vmatmul.mubr.f32.gmra.mrb[0].mxu0 %v19
    %v132 = vpop.f32.mrb[0].mxu0
    %v133 = vadd.f32 %v44, %v132
    %v134 = vpop.f32.mrb[0].mxu0
    %135 = vmatprep.mubr.f32.mxu0 0.0
    %136 = vmatmul.mubr.f32.gmra.mrb[0].mxu0 %v20
    %v137 = vpop.f32.mrb[0].mxu0
    %v138 = vadd.f32 %v44, %v137
    %v139 = vpop.f32.mrb[0].mxu0
    %140 = vmatprep.mubr.f32.mxu0 0.0
    %141 = vmatmul.mubr.f32.gmra.mrb[0].mxu0 %v21
    %v142 = vpop.f32.mrb[0].mxu0
    %v143 = vadd.f32 %v44, %v142
    %v144 = vpop.f32.mrb[0].mxu0
    %145 = vmatprep.mubr.f32.mxu0 0.0
    %146 = vmatmul.mubr.f32.gmra.mrb[0].mxu0 %v22
    %v147 = vpop.f32.mrb[0].mxu0
    %v148 = vadd.f32 %v44, %v147
    %v149 = vpop.f32.mrb[0].mxu0
    %150 = vdwg.mxu0
    %v151 = vmax.f32 %v113, -2.0
    %v152 = vmax.f32 %v118, -2.0
    %v153 = vmax.f32 %v123, -2.0
    %v154 = vmax.f32 %v128, -2.0
    %v155 = vmax.f32 %v133, -2.0
    %v156 = vmax.f32 %v138, -2.0
    %v157 = vmax.f32 %v143, -2.0
    %v158 = vmax.f32 %v148, -2.0
    %v159 = vmin.f32 %v151, 2.0
    %v160 = vmin.f32 %v152, 2.0
    %v161 = vmin.f32 %v153, 2.0
    %v162 = vmin.f32 %v154, 2.0
    %v163 = vmin.f32 %v155, 2.0
    %v164 = vmin.f32 %v156, 2.0
    %v165 = vmin.f32 %v157, 2.0
    %v166 = vmin.f32 %v158, 2.0
    %v167 = vsub.f32 %v159, -2.0
    %v168 = vsub.f32 %v160, -2.0
    %v169 = vsub.f32 %v161, -2.0
    %v170 = vsub.f32 %v162, -2.0
    %v171 = vsub.f32 %v163, -2.0
    %v172 = vsub.f32 %v164, -2.0
    %v173 = vsub.f32 %v165, -2.0
    %v174 = vsub.f32 %v166, -2.0
    %v175 = vmul.f32 %v167, 63.75
    %v176 = vmul.f32 %v168, 63.75
    %v177 = vmul.f32 %v169, 63.75
    %v178 = vmul.f32 %v170, 63.75
    %v179 = vmul.f32 %v171, 63.75
    %v180 = vmul.f32 %v172, 63.75
    %v181 = vmul.f32 %v173, 63.75
    %v182 = vmul.f32 %v174, 63.75
    %v183 = vtrunc.f32 %v175
    %v184 = vtrunc.f32 %v176
    %v185 = vtrunc.f32 %v177
    %v186 = vtrunc.f32 %v178
    %v187 = vtrunc.f32 %v179
    %v188 = vtrunc.f32 %v180
    %v189 = vtrunc.f32 %v181
    %v190 = vtrunc.f32 %v182
    %v191 = vpack.c.f32.eXmY %v183, %v184, 56
    %v195 = vpack.c.f32.eXmY %v185, %v186, 56
    %v199 = vpack.c.b8 %v195, %v191
    %v201 = vpack.c.f32.eXmY %v187, %v188, 56
    %v205 = vpack.c.f32.eXmY %v189, %v190, 56
    %v209 = vpack.c.b8 %v205, %v201
    %v211 = vunpack.c.0.s8 %v199
    %v212 = vunpack.c.1.s8 %v199
    %v213 = vunpack.c.2.s8 %v199
    %v214 = vunpack.c.3.s8 %v199
    %v215 = vunpack.c.0.s8 %v209
    %v216 = vunpack.c.1.s8 %v209
    %v217 = vunpack.c.2.s8 %v209
    %v218 = vunpack.c.3.s8 %v209
    %v219 = vpack.c.b16 %v211, %v211
    %v220 = vpack.c.b8 %v219, %v219
    %v221 = vpack.c.b16 %v212, %v212
    %v222 = vpack.c.b8 %v221, %v221
    %v223 = vpack.c.b16 %v213, %v213
    %v224 = vpack.c.b8 %v223, %v223
    %v225 = vpack.c.b16 %v214, %v214
    %v226 = vpack.c.b8 %v225, %v225
    %v227 = vpack.c.b16 %v215, %v215
    %v228 = vpack.c.b8 %v227, %v227
    %v229 = vpack.c.b16 %v216, %v216
    %v230 = vpack.c.b8 %v229, %v229
    %v231 = vpack.c.b16 %v217, %v217
    %v232 = vpack.c.b8 %v231, %v231
    %v233 = vpack.c.b16 %v218, %v218
    %v234 = vpack.c.b8 %v233, %v233
    %235 = vst [vmem:[#allocation2] sm:$0x3] %v220
    %236 = vst [vmem:[#allocation2 + $0x2] sm:$0x3] %v222
    %237 = vst [vmem:[#allocation2 + $0x4] sm:$0x3] %v224
    %238 = vst [vmem:[#allocation2 + $0x6] sm:$0x3] %v226
    %239 = vst [vmem:[#allocation2 + $0x8] sm:$0x3] %v228
    %240 = vst [vmem:[#allocation2 + $0xa] sm:$0x3] %v230
    %241 = vst [vmem:[#allocation2 + $0xc] sm:$0x3] %v232
    %242 = vst [vmem:[#allocation2 + $0xe] sm:$0x3] %v234
    // Predicated region
    $region14: #{postprocessor.1} parent=1 // pred_check
      _
    $region15: #{postprocessor.1} parent=1 // pred_check_branch
      %244 = sbr.rel (0) target = $region17
    $region16: #{postprocessor.1} parent=1 // pred_region
      %s246 = ssub.s32 256, 224
      %247 = vsyncadd [#allocation3], %s246
      %s248 = sshll.u32 [#allocation2], 4
      %s249 = int_to_ptr.vmem [resolvable:$true] %s248
      %254 = dma.vmem_to_hbm [thread:$0]  %s249, 224, %s3, [#allocation3], 32, 32, 2
    $region17: #{postprocessor.1} parent=1 // pred_fallthru
      _
    // Predicated region
    $region18: #{postprocessor.1} parent=1 // pred_check
      _
    $region19: #{postprocessor.1} parent=1 // pred_check_branch
      %256 = sbr.rel (0) target = $region21
    $region20: #{postprocessor.1} parent=1 // pred_region
      %257 = dma.done [#allocation3], 256
    $region21: #{postprocessor.1} parent=1 // pred_fallthru
      _
    %258 = vsyncpa [#allocation3], 1

</llo_original>
